<compile_context>
chip_gen: v7x
topology: tpu7x:2x2x1
jax: 0.10.0
libtpu: 0.0.40
codegen_flags: <defaults>
</compile_context>

<pallas_src>
import jax
import jax.numpy as jnp
from jax.experimental import pallas as pl
from jax.experimental.pallas import tpu as pltpu

_LANES = 128  # batch rows folded onto the lane axis of the output


def _spherical_dendrite_kernel(x_ref, c_ref, r_ref, o_ref):
    # x_ref: (tbg, 128, D) VMEM tile   (tbg*128 batch rows, full feature dim)
    # c_ref: (1, 1, D)     VMEM        (constant index_map -> stays resident)
    # r_ref: (1, 1)        SMEM scalar
    # o_ref: (tbg, 128)    VMEM        lane-dense per-row result
    diff = x_ref[...] - c_ref[...]                  # VPU broadcast over rows
    sq = diff * diff                                # VPU elementwise
    dist = jnp.sqrt(jnp.sum(sq, axis=-1))           # XLU lane reduce -> (tbg, 128)
    o_ref[...] = r_ref[0, 0] - dist


def spherical_dendrite(x, centroid, radii, *, tb=4096):
    """x: (B, D) f32, centroid: (D,) f32, radii: scalar f32 -> (B,) f32.

    tb = batch rows per grid step, rounded to a multiple of 128 and clamped so
    that small batches use a single small step.  (For genuinely tiny inputs —
    a couple of vregs of data — the pure-JAX expression is cheaper than any
    pallas_call; this wrapper still works correctly there.)
    """
    B, D = x.shape
    x = x.astype(jnp.float32)

    # Row tile: multiple of 128, no larger than the (128-rounded) batch.
    b_ceil = pl.cdiv(B, _LANES) * _LANES
    tb = max(_LANES, (min(tb, b_ceil) // _LANES) * _LANES)

    # Pad the batch up to a whole number of tiles; padded rows are sliced off.
    b_pad = pl.cdiv(B, tb) * tb
    if b_pad != B:
        x = jnp.pad(x, ((0, b_pad - B), (0, 0)))

    g = b_pad // _LANES          # rows of the lane-folded (g, 128, D) view
    tbg = tb // _LANES           # folded rows per grid step
    x3 = x.reshape(g, _LANES, D)                        # contiguous reshape
    c3 = centroid.reshape(1, 1, D).astype(jnp.float32)
    r2 = jnp.asarray(radii, dtype=jnp.float32).reshape(1, 1)

    out = pl.pallas_call(
        _spherical_dendrite_kernel,
        out_shape=jax.ShapeDtypeStruct((g, _LANES), jnp.float32),
        grid=(g // tbg,),
        in_specs=[
            pl.BlockSpec((tbg, _LANES, D), lambda i: (i, 0, 0)),  # x batch tile
            pl.BlockSpec((1, 1, D), lambda i: (0, 0, 0)),         # centroid
            pl.BlockSpec(memory_space=pltpu.SMEM),                # radii scalar
        ],
        out_specs=pl.BlockSpec((tbg, _LANES), lambda i: (i, 0)),  # lane-dense
        compiler_params=pltpu.CompilerParams(
            dimension_semantics=("parallel",)),
    )(x3, c3, r2)

    return out.reshape(b_pad)[:B]


if __name__ == "__main__":
    key = jax.random.PRNGKey(0)
    kx, kc, kx2, kc2 = jax.random.split(key, 4)

    # Case 1: lane-aligned feature dim, batch NOT divisible by the tile
    # (exercises the padding path and the lane-folded output).
    B, D = 300, 128
    x = jax.random.normal(kx, (B, D), dtype=jnp.float32)
    centroid = jax.random.normal(kc, (D,), dtype=jnp.float32)
    radii = jnp.float32(2.5)

    out = jax.block_until_ready(spherical_dendrite(x, centroid, radii))
    ref = radii - jnp.sqrt(jnp.sum((x - centroid[None, :]) ** 2, axis=1))
    assert out.shape == (B,)
    assert jnp.allclose(out, ref, rtol=1e-5, atol=1e-5), "case 1 mismatch"

    # Case 2: tiny batch, wider feature dim (multi-vreg lane reduction).
    B2, D2 = 8, 256
    x2 = jax.random.normal(kx2, (B2, D2), dtype=jnp.float32)
    c2 = jax.random.normal(kc2, (D2,), dtype=jnp.float32)
    r2 = jnp.float32(0.75)

    out2 = jax.block_until_ready(spherical_dendrite(x2, c2, r2))
    ref2 = r2 - jnp.sqrt(jnp.sum((x2 - c2[None, :]) ** 2, axis=1))
    assert out2.shape == (B2,)
    assert jnp.allclose(out2, ref2, rtol=1e-5, atol=1e-5), "case 2 mismatch"

    print("KERNEL_OK")
</pallas_src>

<mosaic_0001>
module attributes {stable_mosaic.version = 11 : i64} {
  func.func @_spherical_dendrite_kernel(%arg0: i32, %arg1: memref<3x128x128xf32, #tpu.memory_space<vmem>>, %arg2: memref<1x1x128xf32, #tpu.memory_space<vmem>>, %arg3: memref<1x1xf32, #tpu.memory_space<smem>>, %arg4: memref<3x128xf32, #tpu.memory_space<vmem>>) attributes {dimension_semantics = [#tpu.dimension_semantics<parallel>], iteration_bounds = array<i64: 1>, scalar_prefetch = 0 : i64, scratch_operands = 0 : i64, tpu.core_type = #tpu.core_type<tc>, window_params = [{transform_indices = @transform_0, window_bounds = array<i64: 3, 128, 128>}, {pipeline_mode = #tpu.pipeline_mode<synchronous>, transform_indices = @transform_1, window_bounds = array<i64: 1, 1, 128>}, {transform_indices = @transform_2, window_bounds = array<i64: 1, 1>}, {transform_indices = @transform_3, window_bounds = array<i64: 3, 128>}]} {
    %c0 = arith.constant 0 : index
    %c0_0 = arith.constant 0 : index
    %c0_1 = arith.constant 0 : index
    %0 = vector.load %arg1[%c0, %c0_0, %c0_1] : memref<3x128x128xf32, #tpu.memory_space<vmem>>, vector<3x128x128xf32>
    %c0_2 = arith.constant 0 : index
    %c0_3 = arith.constant 0 : index
    %c0_4 = arith.constant 0 : index
    %1 = vector.load %arg2[%c0_2, %c0_3, %c0_4] : memref<1x1x128xf32, #tpu.memory_space<vmem>>, vector<1x1x128xf32>
    %2 = vector.broadcast %1 : vector<1x1x128xf32> to vector<3x128x128xf32>
    %3 = arith.subf %0, %2 : vector<3x128x128xf32>
    %4 = arith.mulf %3, %3 : vector<3x128x128xf32>
    %cst = arith.constant dense<0.000000e+00> : vector<3x128xf32>
    %5 = vector.multi_reduction <add>, %4, %cst [2] : vector<3x128x128xf32> to vector<3x128xf32>
    %6 = math.sqrt %5 : vector<3x128xf32>
    %c0_5 = arith.constant 0 : index
    %c0_6 = arith.constant 0 : index
    %7 = memref.load %arg3[%c0_5, %c0_6] : memref<1x1xf32, #tpu.memory_space<smem>>
    %8 = vector.broadcast %7 : f32 to vector<3x128xf32>
    %9 = arith.subf %8, %6 : vector<3x128xf32>
    %c0_7 = arith.constant 0 : index
    %c0_8 = arith.constant 0 : index
    %10 = vector.load %arg4[%c0_7, %c0_8] : memref<3x128xf32, #tpu.memory_space<vmem>>, vector<3x128xf32>
    tpu.vector_store %arg4[%c0_7, %c0_8], %9 {strides = array<i32>} : memref<3x128xf32, #tpu.memory_space<vmem>>, vector<3x128xf32>,
    return
  }
  func.func @transform_0(%arg0: i32) -> (i32, i32, i32) {
    %c0_i32 = arith.constant 0 : i32
    %c0_i32_0 = arith.constant 0 : i32
    %c0_i32_1 = arith.constant 0 : i32
    return %arg0, %c0_i32, %c0_i32_0 : i32, i32, i32
  }
  func.func @transform_1(%arg0: i32) -> (i32, i32, i32) {
    %c0_i32 = arith.constant 0 : i32
    %c0_i32_0 = arith.constant 0 : i32
    %c0_i32_1 = arith.constant 0 : i32
    %c0_i32_2 = arith.constant 0 : i32
    return %c0_i32, %c0_i32_0, %c0_i32_1 : i32, i32, i32
  }
  func.func @transform_2(%arg0: i32) -> (i32, i32) {
    %c0_i32 = arith.constant 0 : i32
    %c0_i32_0 = arith.constant 0 : i32
    %c0_i32_1 = arith.constant 0 : i32
    return %c0_i32, %c0_i32_0 : i32, i32
  }
  func.func @transform_3(%arg0: i32) -> (i32, i32) {
    %c0_i32 = arith.constant 0 : i32
    %c0_i32_0 = arith.constant 0 : i32
    return %arg0, %c0_i32 : i32, i32
  }
}

</mosaic_0001>

<llo_original>
// kernel: tpu_custom_call.1
$region0: #{tpu_custom_call.1}
  #allocation0 [shape = 'u32[]', space=smem, size = 0x4, offset = 0x4, fixed_abs, tag = 'smem constant byte address 0x4 - core index']
  #allocation1 [shape = 'u32[144,128]{1,0:T(1,128)}', space=vmem, size = 0x12000, scoped, tag = 'internal scratch']
  #allocation2 [shape = 'f32[1,1]{1,0:T(1,128)S(6)}', space=smem, size = 0x200, scoped, tag = 'scoped memory for tpu_custom_call.1']
  %s0 = inlined_call_operand.hbm [shape: f32[3,128,128], index: 0, kind: input, shape index: {}]
  %s1 = inlined_call_operand.vmem [shape: f32[1,1,128], index: 1, kind: input, shape index: {}]
  %s2 = inlined_call_operand.<no memory space> [shape: f32[1,1], index: 2, kind: input, shape index: {}]
  %s3 = inlined_call_operand.hbm [shape: f32[3,128], index: 3, kind: output, shape index: {}]
  %s4 = sld [smem:[#allocation0]]
  $region26: #{tpu_custom_call.1} parent=0
    _
  %s6 = ssub.s32 1, %s4
  %s7 = scalar_select 0, %s6, %s4
  %8 = sst [smem:[#allocation2]] %s2
  $region1: #{tpu_custom_call.1} parent=0
    #allocation3 [shape = 'u8[196608]{0}', space=vmem, size = 0x30000, scoped, tag = 'input window, operand 0, single buffered']
    #allocation4 [shape = 's32[1]{0}', space=sflag, size = 0x4, scoped, tag = 'scoped memory for tpu_custom_call.1']
    #allocation5 [shape = 's32[1]{0}', space=sflag, size = 0x4, scoped, tag = 'scoped memory for tpu_custom_call.1']
    #allocation6 [shape = 'u8[2048]{0}', space=vmem, size = 0x800, scoped, tag = 'output window, operand 0, single buffered']
    %9 = vsyncpa [#allocation4], 0
    %10 = vsyncpa [#allocation5], 0
    // Predicated region
    $region2: #{tpu_custom_call.1} parent=1 // pred_check
      _
    $region3: #{tpu_custom_call.1} parent=1 // pred_check_branch
      %12 = sbr.rel (0) target = $region5
    $region4: #{tpu_custom_call.1} parent=1 // pred_region
      %s14 = ssub.s32 6144, 6144
      %15 = vsyncadd [#allocation4], %s14
      %s16 = sshll.u32 [#allocation3], 4
      %s17 = int_to_ptr.vmem [resolvable:$true] %s16
      %22 = dma.hbm_to_vmem [thread:$0]  %s0, 6144, %s17, [#allocation4], 128, 128, 8
    $region5: #{tpu_custom_call.1} parent=1 // pred_fallthru
      _
    // Predicated region
    $region6: #{tpu_custom_call.1} parent=1 // pred_check
      _
    $region7: #{tpu_custom_call.1} parent=1 // pred_check_branch
      %24 = sbr.rel (0) target = $region9
    $region8: #{tpu_custom_call.1} parent=1 // pred_region
      _
    $region9: #{tpu_custom_call.1} parent=1 // pred_fallthru
      _
    // Predicated region
    $region10: #{tpu_custom_call.1} parent=1 // pred_check
      _
    $region11: #{tpu_custom_call.1} parent=1 // pred_check_branch
      %26 = sbr.rel (0) target = $region13
    $region12: #{tpu_custom_call.1} parent=1 // pred_region
      _
    $region13: #{tpu_custom_call.1} parent=1 // pred_fallthru
      _
    // Predicated region
    $region14: #{tpu_custom_call.1} parent=1 // pred_check
      _
    $region15: #{tpu_custom_call.1} parent=1 // pred_check_branch
      %28 = sbr.rel (0) target = $region17
    $region16: #{tpu_custom_call.1} parent=1 // pred_region
      %29 = dma.done [#allocation4], 6144
    $region17: #{tpu_custom_call.1} parent=1 // pred_fallthru
      _
    %v30 = vld [vmem:[#allocation3] sm:$0xff]
    %v31 = vld [vmem:[#allocation3 + $0x8] sm:$0xff]
    %v32 = vld [vmem:[#allocation3 + $0x10] sm:$0xff]
    %v33 = vld [vmem:[#allocation3 + $0x18] sm:$0xff]
    %v34 = vld [vmem:[#allocation3 + $0x20] sm:$0xff]
    %v35 = vld [vmem:[#allocation3 + $0x28] sm:$0xff]
    %v36 = vld [vmem:[#allocation3 + $0x30] sm:$0xff]
    %v37 = vld [vmem:[#allocation3 + $0x38] sm:$0xff]
    %v38 = vld [vmem:[#allocation3 + $0x40] sm:$0xff]
    %v39 = vld [vmem:[#allocation3 + $0x48] sm:$0xff]
    %v40 = vld [vmem:[#allocation3 + $0x50] sm:$0xff]
    %v41 = vld [vmem:[#allocation3 + $0x58] sm:$0xff]
    %v42 = vld [vmem:[#allocation3 + $0x60] sm:$0xff]
    %v43 = vld [vmem:[#allocation3 + $0x68] sm:$0xff]
    %v44 = vld [vmem:[#allocation3 + $0x70] sm:$0xff]
    %v45 = vld [vmem:[#allocation3 + $0x78] sm:$0xff]
    %v46 = vld [vmem:[#allocation3 + $0x80] sm:$0xff]
    %v47 = vld [vmem:[#allocation3 + $0x88] sm:$0xff]
    %v48 = vld [vmem:[#allocation3 + $0x90] sm:$0xff]
    %v49 = vld [vmem:[#allocation3 + $0x98] sm:$0xff]
    %v50 = vld [vmem:[#allocation3 + $0xa0] sm:$0xff]
    %v51 = vld [vmem:[#allocation3 + $0xa8] sm:$0xff]
    %v52 = vld [vmem:[#allocation3 + $0xb0] sm:$0xff]
    %v53 = vld [vmem:[#allocation3 + $0xb8] sm:$0xff]
    %v54 = vld [vmem:[#allocation3 + $0xc0] sm:$0xff]
    %v55 = vld [vmem:[#allocation3 + $0xc8] sm:$0xff]
    %v56 = vld [vmem:[#allocation3 + $0xd0] sm:$0xff]
    %v57 = vld [vmem:[#allocation3 + $0xd8] sm:$0xff]
    %v58 = vld [vmem:[#allocation3 + $0xe0] sm:$0xff]
    %v59 = vld [vmem:[#allocation3 + $0xe8] sm:$0xff]
    %v60 = vld [vmem:[#allocation3 + $0xf0] sm:$0xff]
    %v61 = vld [vmem:[#allocation3 + $0xf8] sm:$0xff]
    %v62 = vld [vmem:[#allocation3 + $0x100] sm:$0xff]
    %v63 = vld [vmem:[#allocation3 + $0x108] sm:$0xff]
    %v64 = vld [vmem:[#allocation3 + $0x110] sm:$0xff]
    %v65 = vld [vmem:[#allocation3 + $0x118] sm:$0xff]
    %v66 = vld [vmem:[#allocation3 + $0x120] sm:$0xff]
    %v67 = vld [vmem:[#allocation3 + $0x128] sm:$0xff]
    %v68 = vld [vmem:[#allocation3 + $0x130] sm:$0xff]
    %v69 = vld [vmem:[#allocation3 + $0x138] sm:$0xff]
    %v70 = vld [vmem:[#allocation3 + $0x140] sm:$0xff]
    %v71 = vld [vmem:[#allocation3 + $0x148] sm:$0xff]
    %v72 = vld [vmem:[#allocation3 + $0x150] sm:$0xff]
    %v73 = vld [vmem:[#allocation3 + $0x158] sm:$0xff]
    %v74 = vld [vmem:[#allocation3 + $0x160] sm:$0xff]
    %v75 = vld [vmem:[#allocation3 + $0x168] sm:$0xff]
    %v76 = vld [vmem:[#allocation3 + $0x170] sm:$0xff]
    %v77 = vld [vmem:[#allocation3 + $0x178] sm:$0xff]
    %v78 = vld [vmem:[%s1] sm:$0x1]
    %v80 = vlaneseq
    %v81 = vshrl.u32 %v80, 7
    %v82 = vsub.s32 0, %v81
    %v83 = vrot.slane %v78, %v82
    %v85 = vsub.f32 %v30, %v83
    %v86 = vsub.f32 %v31, %v83
    %v87 = vsub.f32 %v32, %v83
    %v88 = vsub.f32 %v33, %v83
    %v89 = vsub.f32 %v34, %v83
    %v90 = vsub.f32 %v35, %v83
    %v91 = vsub.f32 %v36, %v83
    %v92 = vsub.f32 %v37, %v83
    %v93 = vsub.f32 %v38, %v83
    %v94 = vsub.f32 %v39, %v83
    %v95 = vsub.f32 %v40, %v83
    %v96 = vsub.f32 %v41, %v83
    %v97 = vsub.f32 %v42, %v83
    %v98 = vsub.f32 %v43, %v83
    %v99 = vsub.f32 %v44, %v83
    %v100 = vsub.f32 %v45, %v83
    %v101 = vsub.f32 %v46, %v83
    %v102 = vsub.f32 %v47, %v83
    %v103 = vsub.f32 %v48, %v83
    %v104 = vsub.f32 %v49, %v83
    %v105 = vsub.f32 %v50, %v83
    %v106 = vsub.f32 %v51, %v83
    %v107 = vsub.f32 %v52, %v83
    %v108 = vsub.f32 %v53, %v83
    %v109 = vsub.f32 %v54, %v83
    %v110 = vsub.f32 %v55, %v83
    %v111 = vsub.f32 %v56, %v83
    %v112 = vsub.f32 %v57, %v83
    %v113 = vsub.f32 %v58, %v83
    %v114 = vsub.f32 %v59, %v83
    %v115 = vsub.f32 %v60, %v83
    %v116 = vsub.f32 %v61, %v83
    %v117 = vsub.f32 %v62, %v83
    %v118 = vsub.f32 %v63, %v83
    %v119 = vsub.f32 %v64, %v83
    %v120 = vsub.f32 %v65, %v83
    %v121 = vsub.f32 %v66, %v83
    %v122 = vsub.f32 %v67, %v83
    %v123 = vsub.f32 %v68, %v83
    %v124 = vsub.f32 %v69, %v83
    %v125 = vsub.f32 %v70, %v83
    %v126 = vsub.f32 %v71, %v83
    %v127 = vsub.f32 %v72, %v83
    %v128 = vsub.f32 %v73, %v83
    %v129 = vsub.f32 %v74, %v83
    %v130 = vsub.f32 %v75, %v83
    %v131 = vsub.f32 %v76, %v83
    %v132 = vsub.f32 %v77, %v83
    %v133 = vmul.f32 %v85, %v85
    %v134 = vmul.f32 %v86, %v86
    %v135 = vmul.f32 %v87, %v87
    %v136 = vmul.f32 %v88, %v88
    %v137 = vmul.f32 %v89, %v89
    %v138 = vmul.f32 %v90, %v90
    %v139 = vmul.f32 %v91, %v91
    %v140 = vmul.f32 %v92, %v92
    %v141 = vmul.f32 %v93, %v93
    %v142 = vmul.f32 %v94, %v94
    %v143 = vmul.f32 %v95, %v95
    %v144 = vmul.f32 %v96, %v96
    %v145 = vmul.f32 %v97, %v97
    %v146 = vmul.f32 %v98, %v98
    %v147 = vmul.f32 %v99, %v99
    %v148 = vmul.f32 %v100, %v100
    %v149 = vmul.f32 %v101, %v101
    %v150 = vmul.f32 %v102, %v102
    %v151 = vmul.f32 %v103, %v103
    %v152 = vmul.f32 %v104, %v104
    %v153 = vmul.f32 %v105, %v105
    %v154 = vmul.f32 %v106, %v106
    %v155 = vmul.f32 %v107, %v107
    %v156 = vmul.f32 %v108, %v108
    %v157 = vmul.f32 %v109, %v109
    %v158 = vmul.f32 %v110, %v110
    %v159 = vmul.f32 %v111, %v111
    %v160 = vmul.f32 %v112, %v112
    %v161 = vmul.f32 %v113, %v113
    %v162 = vmul.f32 %v114, %v114
    %v163 = vmul.f32 %v115, %v115
    %v164 = vmul.f32 %v116, %v116
    %v165 = vmul.f32 %v117, %v117
    %v166 = vmul.f32 %v118, %v118
    %v167 = vmul.f32 %v119, %v119
    %v168 = vmul.f32 %v120, %v120
    %v169 = vmul.f32 %v121, %v121
    %v170 = vmul.f32 %v122, %v122
    %v171 = vmul.f32 %v123, %v123
    %v172 = vmul.f32 %v124, %v124
    %v173 = vmul.f32 %v125, %v125
    %v174 = vmul.f32 %v126, %v126
    %v175 = vmul.f32 %v127, %v127
    %v176 = vmul.f32 %v128, %v128
    %v177 = vmul.f32 %v129, %v129
    %v178 = vmul.f32 %v130, %v130
    %v179 = vmul.f32 %v131, %v131
    %v180 = vmul.f32 %v132, %v132
    %181 = vadd.xlane.f32.xlu0 %v133
    %v182 = vpop.xlane.xlu0 %181
    %183 = vadd.xlane.f32.xlu0 %v134
    %v184 = vpop.xlane.xlu0 %183
    %185 = vadd.xlane.f32.xlu0 %v135
    %v186 = vpop.xlane.xlu0 %185
    %187 = vadd.xlane.f32.xlu0 %v136
    %v188 = vpop.xlane.xlu0 %187
    %189 = vadd.xlane.f32.xlu0 %v137
    %v190 = vpop.xlane.xlu0 %189
    %191 = vadd.xlane.f32.xlu0 %v138
    %v192 = vpop.xlane.xlu0 %191
    %193 = vadd.xlane.f32.xlu0 %v139
    %v194 = vpop.xlane.xlu0 %193
    %195 = vadd.xlane.f32.xlu0 %v140
    %v196 = vpop.xlane.xlu0 %195
    %197 = vadd.xlane.f32.xlu0 %v141
    %v198 = vpop.xlane.xlu0 %197
    %199 = vadd.xlane.f32.xlu0 %v142
    %v200 = vpop.xlane.xlu0 %199
    %201 = vadd.xlane.f32.xlu0 %v143
    %v202 = vpop.xlane.xlu0 %201
    %203 = vadd.xlane.f32.xlu0 %v144
    %v204 = vpop.xlane.xlu0 %203
    %205 = vadd.xlane.f32.xlu0 %v145
    %v206 = vpop.xlane.xlu0 %205
    %207 = vadd.xlane.f32.xlu0 %v146
    %v208 = vpop.xlane.xlu0 %207
    %209 = vadd.xlane.f32.xlu0 %v147
    %v210 = vpop.xlane.xlu0 %209
    %211 = vadd.xlane.f32.xlu0 %v148
    %v212 = vpop.xlane.xlu0 %211
    %213 = vadd.xlane.f32.xlu0 %v149
    %v214 = vpop.xlane.xlu0 %213
    %215 = vadd.xlane.f32.xlu0 %v150
    %v216 = vpop.xlane.xlu0 %215
    %217 = vadd.xlane.f32.xlu0 %v151
    %v218 = vpop.xlane.xlu0 %217
    %219 = vadd.xlane.f32.xlu0 %v152
    %v220 = vpop.xlane.xlu0 %219
    %221 = vadd.xlane.f32.xlu0 %v153
    %v222 = vpop.xlane.xlu0 %221
    %223 = vadd.xlane.f32.xlu0 %v154
    %v224 = vpop.xlane.xlu0 %223
    %225 = vadd.xlane.f32.xlu0 %v155
    %v226 = vpop.xlane.xlu0 %225
    %227 = vadd.xlane.f32.xlu0 %v156
    %v228 = vpop.xlane.xlu0 %227
    %229 = vadd.xlane.f32.xlu0 %v157
    %v230 = vpop.xlane.xlu0 %229
    %231 = vadd.xlane.f32.xlu0 %v158
    %v232 = vpop.xlane.xlu0 %231
    %233 = vadd.xlane.f32.xlu0 %v159
    %v234 = vpop.xlane.xlu0 %233
    %235 = vadd.xlane.f32.xlu0 %v160
    %v236 = vpop.xlane.xlu0 %235
    %237 = vadd.xlane.f32.xlu0 %v161
    %v238 = vpop.xlane.xlu0 %237
    %239 = vadd.xlane.f32.xlu0 %v162
    %v240 = vpop.xlane.xlu0 %239
    %241 = vadd.xlane.f32.xlu0 %v163
    %v242 = vpop.xlane.xlu0 %241
    %243 = vadd.xlane.f32.xlu0 %v164
    %v244 = vpop.xlane.xlu0 %243
    %245 = vadd.xlane.f32.xlu0 %v165
    %v246 = vpop.xlane.xlu0 %245
    %247 = vadd.xlane.f32.xlu0 %v166
    %v248 = vpop.xlane.xlu0 %247
    %249 = vadd.xlane.f32.xlu0 %v167
    %v250 = vpop.xlane.xlu0 %249
    %251 = vadd.xlane.f32.xlu0 %v168
    %v252 = vpop.xlane.xlu0 %251
    %253 = vadd.xlane.f32.xlu0 %v169
    %v254 = vpop.xlane.xlu0 %253
    %255 = vadd.xlane.f32.xlu0 %v170
    %v256 = vpop.xlane.xlu0 %255
    %257 = vadd.xlane.f32.xlu0 %v171
    %v258 = vpop.xlane.xlu0 %257
    %259 = vadd.xlane.f32.xlu0 %v172
    %v260 = vpop.xlane.xlu0 %259
    %261 = vadd.xlane.f32.xlu0 %v173
    %v262 = vpop.xlane.xlu0 %261
    %263 = vadd.xlane.f32.xlu0 %v174
    %v264 = vpop.xlane.xlu0 %263
    %265 = vadd.xlane.f32.xlu0 %v175
    %v266 = vpop.xlane.xlu0 %265
    %267 = vadd.xlane.f32.xlu0 %v176
    %v268 = vpop.xlane.xlu0 %267
    %269 = vadd.xlane.f32.xlu0 %v177
    %v270 = vpop.xlane.xlu0 %269
    %271 = vadd.xlane.f32.xlu0 %v178
    %v272 = vpop.xlane.xlu0 %271
    %273 = vadd.xlane.f32.xlu0 %v179
    %v274 = vpop.xlane.xlu0 %273
    %275 = vadd.xlane.f32.xlu0 %v180
    %v276 = vpop.xlane.xlu0 %275
    %v277 = vrsqrt.pop %v182
    %v278 = vmul.f32 %v182, %v277
    %vm279 = vcmp.eq.f32.partialorder %v182, inf
    %v280 = vsel %vm279, %v182, %v278
    %vm281 = vcmp.eq.f32.partialorder %v182, 0.0
    %v282 = vand.u32 %v182, 2147483648
    %v283 = vsel %vm281, %v282, %v280
    %v284 = vrsqrt.pop %v184
    %v285 = vmul.f32 %v184, %v284
    %vm286 = vcmp.eq.f32.partialorder %v184, inf
    %v287 = vsel %vm286, %v184, %v285
    %vm288 = vcmp.eq.f32.partialorder %v184, 0.0
    %v289 = vand.u32 %v184, 2147483648
    %v290 = vsel %vm288, %v289, %v287
    %v291 = vrsqrt.pop %v186
    %v292 = vmul.f32 %v186, %v291
    %vm293 = vcmp.eq.f32.partialorder %v186, inf
    %v294 = vsel %vm293, %v186, %v292
    %vm295 = vcmp.eq.f32.partialorder %v186, 0.0
    %v296 = vand.u32 %v186, 2147483648
    %v297 = vsel %vm295, %v296, %v294
    %v298 = vrsqrt.pop %v188
    %v299 = vmul.f32 %v188, %v298
    %vm300 = vcmp.eq.f32.partialorder %v188, inf
    %v301 = vsel %vm300, %v188, %v299
    %vm302 = vcmp.eq.f32.partialorder %v188, 0.0
    %v303 = vand.u32 %v188, 2147483648
    %v304 = vsel %vm302, %v303, %v301
    %v305 = vrsqrt.pop %v190
    %v306 = vmul.f32 %v190, %v305
    %vm307 = vcmp.eq.f32.partialorder %v190, inf
    %v308 = vsel %vm307, %v190, %v306
    %vm309 = vcmp.eq.f32.partialorder %v190, 0.0
    %v310 = vand.u32 %v190, 2147483648
    %v311 = vsel %vm309, %v310, %v308
    %v312 = vrsqrt.pop %v192
    %v313 = vmul.f32 %v192, %v312
    %vm314 = vcmp.eq.f32.partialorder %v192, inf
    %v315 = vsel %vm314, %v192, %v313
    %vm316 = vcmp.eq.f32.partialorder %v192, 0.0
    %v317 = vand.u32 %v192, 2147483648
    %v318 = vsel %vm316, %v317, %v315
    %v319 = vrsqrt.pop %v194
    %v320 = vmul.f32 %v194, %v319
    %vm321 = vcmp.eq.f32.partialorder %v194, inf
    %v322 = vsel %vm321, %v194, %v320
    %vm323 = vcmp.eq.f32.partialorder %v194, 0.0
    %v324 = vand.u32 %v194, 2147483648
    %v325 = vsel %vm323, %v324, %v322
    %v326 = vrsqrt.pop %v196
    %v327 = vmul.f32 %v196, %v326
    %vm328 = vcmp.eq.f32.partialorder %v196, inf
    %v329 = vsel %vm328, %v196, %v327
    %vm330 = vcmp.eq.f32.partialorder %v196, 0.0
    %v331 = vand.u32 %v196, 2147483648
    %v332 = vsel %vm330, %v331, %v329
    %v333 = vrsqrt.pop %v198
    %v334 = vmul.f32 %v198, %v333
    %vm335 = vcmp.eq.f32.partialorder %v198, inf
    %v336 = vsel %vm335, %v198, %v334
    %vm337 = vcmp.eq.f32.partialorder %v198, 0.0
    %v338 = vand.u32 %v198, 2147483648
    %v339 = vsel %vm337, %v338, %v336
    %v340 = vrsqrt.pop %v200
    %v341 = vmul.f32 %v200, %v340
    %vm342 = vcmp.eq.f32.partialorder %v200, inf
    %v343 = vsel %vm342, %v200, %v341
    %vm344 = vcmp.eq.f32.partialorder %v200, 0.0
    %v345 = vand.u32 %v200, 2147483648
    %v346 = vsel %vm344, %v345, %v343
    %v347 = vrsqrt.pop %v202
    %v348 = vmul.f32 %v202, %v347
    %vm349 = vcmp.eq.f32.partialorder %v202, inf
    %v350 = vsel %vm349, %v202, %v348
    %vm351 = vcmp.eq.f32.partialorder %v202, 0.0
    %v352 = vand.u32 %v202, 2147483648
    %v353 = vsel %vm351, %v352, %v350
    %v354 = vrsqrt.pop %v204
    %v355 = vmul.f32 %v204, %v354
    %vm356 = vcmp.eq.f32.partialorder %v204, inf
    %v357 = vsel %vm356, %v204, %v355
    %vm358 = vcmp.eq.f32.partialorder %v204, 0.0
    %v359 = vand.u32 %v204, 2147483648
    %v360 = vsel %vm358, %v359, %v357
    %v361 = vrsqrt.pop %v206
    %v362 = vmul.f32 %v206, %v361
    %vm363 = vcmp.eq.f32.partialorder %v206, inf
    %v364 = vsel %vm363, %v206, %v362
    %vm365 = vcmp.eq.f32.partialorder %v206, 0.0
    %v366 = vand.u32 %v206, 2147483648
    %v367 = vsel %vm365, %v366, %v364
    %v368 = vrsqrt.pop %v208
    %v369 = vmul.f32 %v208, %v368
    %vm370 = vcmp.eq.f32.partialorder %v208, inf
    %v371 = vsel %vm370, %v208, %v369
    %vm372 = vcmp.eq.f32.partialorder %v208, 0.0
    %v373 = vand.u32 %v208, 2147483648
    %v374 = vsel %vm372, %v373, %v371
    %v375 = vrsqrt.pop %v210
    %v376 = vmul.f32 %v210, %v375
    %vm377 = vcmp.eq.f32.partialorder %v210, inf
    %v378 = vsel %vm377, %v210, %v376
    %vm379 = vcmp.eq.f32.partialorder %v210, 0.0
    %v380 = vand.u32 %v210, 2147483648
    %v381 = vsel %vm379, %v380, %v378
    %v382 = vrsqrt.pop %v212
    %v383 = vmul.f32 %v212, %v382
    %vm384 = vcmp.eq.f32.partialorder %v212, inf
    %v385 = vsel %vm384, %v212, %v383
    %vm386 = vcmp.eq.f32.partialorder %v212, 0.0
    %v387 = vand.u32 %v212, 2147483648
    %v388 = vsel %vm386, %v387, %v385
    %v389 = vrsqrt.pop %v214
    %v390 = vmul.f32 %v214, %v389
    %vm391 = vcmp.eq.f32.partialorder %v214, inf
    %v392 = vsel %vm391, %v214, %v390
    %vm393 = vcmp.eq.f32.partialorder %v214, 0.0
    %v394 = vand.u32 %v214, 2147483648
    %v395 = vsel %vm393, %v394, %v392
    %v396 = vrsqrt.pop %v216
    %v397 = vmul.f32 %v216, %v396
    %vm398 = vcmp.eq.f32.partialorder %v216, inf
    %v399 = vsel %vm398, %v216, %v397
    %vm400 = vcmp.eq.f32.partialorder %v216, 0.0
    %v401 = vand.u32 %v216, 2147483648
    %v402 = vsel %vm400, %v401, %v399
    %v403 = vrsqrt.pop %v218
    %v404 = vmul.f32 %v218, %v403
    %vm405 = vcmp.eq.f32.partialorder %v218, inf
    %v406 = vsel %vm405, %v218, %v404
    %vm407 = vcmp.eq.f32.partialorder %v218, 0.0
    %v408 = vand.u32 %v218, 2147483648
    %v409 = vsel %vm407, %v408, %v406
    %v410 = vrsqrt.pop %v220
    %v411 = vmul.f32 %v220, %v410
    %vm412 = vcmp.eq.f32.partialorder %v220, inf
    %v413 = vsel %vm412, %v220, %v411
    %vm414 = vcmp.eq.f32.partialorder %v220, 0.0
    %v415 = vand.u32 %v220, 2147483648
    %v416 = vsel %vm414, %v415, %v413
    %v417 = vrsqrt.pop %v222
    %v418 = vmul.f32 %v222, %v417
    %vm419 = vcmp.eq.f32.partialorder %v222, inf
    %v420 = vsel %vm419, %v222, %v418
    %vm421 = vcmp.eq.f32.partialorder %v222, 0.0
    %v422 = vand.u32 %v222, 2147483648
    %v423 = vsel %vm421, %v422, %v420
    %v424 = vrsqrt.pop %v224
    %v425 = vmul.f32 %v224, %v424
    %vm426 = vcmp.eq.f32.partialorder %v224, inf
    %v427 = vsel %vm426, %v224, %v425
    %vm428 = vcmp.eq.f32.partialorder %v224, 0.0
    %v429 = vand.u32 %v224, 2147483648
    %v430 = vsel %vm428, %v429, %v427
    %v431 = vrsqrt.pop %v226
    %v432 = vmul.f32 %v226, %v431
    %vm433 = vcmp.eq.f32.partialorder %v226, inf
    %v434 = vsel %vm433, %v226, %v432
    %vm435 = vcmp.eq.f32.partialorder %v226, 0.0
    %v436 = vand.u32 %v226, 2147483648
    %v437 = vsel %vm435, %v436, %v434
    %v438 = vrsqrt.pop %v228
    %v439 = vmul.f32 %v228, %v438
    %vm440 = vcmp.eq.f32.partialorder %v228, inf
    %v441 = vsel %vm440, %v228, %v439
    %vm442 = vcmp.eq.f32.partialorder %v228, 0.0
    %v443 = vand.u32 %v228, 2147483648
    %v444 = vsel %vm442, %v443, %v441
    %v445 = vrsqrt.pop %v230
    %v446 = vmul.f32 %v230, %v445
    %vm447 = vcmp.eq.f32.partialorder %v230, inf
    %v448 = vsel %vm447, %v230, %v446
    %vm449 = vcmp.eq.f32.partialorder %v230, 0.0
    %v450 = vand.u32 %v230, 2147483648
    %v451 = vsel %vm449, %v450, %v448
    %v452 = vrsqrt.pop %v232
    %v453 = vmul.f32 %v232, %v452
    %vm454 = vcmp.eq.f32.partialorder %v232, inf
    %v455 = vsel %vm454, %v232, %v453
    %vm456 = vcmp.eq.f32.partialorder %v232, 0.0
    %v457 = vand.u32 %v232, 2147483648
    %v458 = vsel %vm456, %v457, %v455
    %v459 = vrsqrt.pop %v234
    %v460 = vmul.f32 %v234, %v459
    %vm461 = vcmp.eq.f32.partialorder %v234, inf
    %v462 = vsel %vm461, %v234, %v460
    %vm463 = vcmp.eq.f32.partialorder %v234, 0.0
    %v464 = vand.u32 %v234, 2147483648
    %v465 = vsel %vm463, %v464, %v462
    %v466 = vrsqrt.pop %v236
    %v467 = vmul.f32 %v236, %v466
    %vm468 = vcmp.eq.f32.partialorder %v236, inf
    %v469 = vsel %vm468, %v236, %v467
    %vm470 = vcmp.eq.f32.partialorder %v236, 0.0
    %v471 = vand.u32 %v236, 2147483648
    %v472 = vsel %vm470, %v471, %v469
    %v473 = vrsqrt.pop %v238
    %v474 = vmul.f32 %v238, %v473
    %vm475 = vcmp.eq.f32.partialorder %v238, inf
    %v476 = vsel %vm475, %v238, %v474
    %vm477 = vcmp.eq.f32.partialorder %v238, 0.0
    %v478 = vand.u32 %v238, 2147483648
    %v479 = vsel %vm477, %v478, %v476
    %v480 = vrsqrt.pop %v240
    %v481 = vmul.f32 %v240, %v480
    %vm482 = vcmp.eq.f32.partialorder %v240, inf
    %v483 = vsel %vm482, %v240, %v481
    %vm484 = vcmp.eq.f32.partialorder %v240, 0.0
    %v485 = vand.u32 %v240, 2147483648
    %v486 = vsel %vm484, %v485, %v483
    %v487 = vrsqrt.pop %v242
    %v488 = vmul.f32 %v242, %v487
    %vm489 = vcmp.eq.f32.partialorder %v242, inf
    %v490 = vsel %vm489, %v242, %v488
    %vm491 = vcmp.eq.f32.partialorder %v242, 0.0
    %v492 = vand.u32 %v242, 2147483648
    %v493 = vsel %vm491, %v492, %v490
    %v494 = vrsqrt.pop %v244
    %v495 = vmul.f32 %v244, %v494
    %vm496 = vcmp.eq.f32.partialorder %v244, inf
    %v497 = vsel %vm496, %v244, %v495
    %vm498 = vcmp.eq.f32.partialorder %v244, 0.0
    %v499 = vand.u32 %v244, 2147483648
    %v500 = vsel %vm498, %v499, %v497
    %v501 = vrsqrt.pop %v246
    %v502 = vmul.f32 %v246, %v501
    %vm503 = vcmp.eq.f32.partialorder %v246, inf
    %v504 = vsel %vm503, %v246, %v502
    %vm505 = vcmp.eq.f32.partialorder %v246, 0.0
    %v506 = vand.u32 %v246, 2147483648
    %v507 = vsel %vm505, %v506, %v504
    %v508 = vrsqrt.pop %v248
    %v509 = vmul.f32 %v248, %v508
    %vm510 = vcmp.eq.f32.partialorder %v248, inf
    %v511 = vsel %vm510, %v248, %v509
    %vm512 = vcmp.eq.f32.partialorder %v248, 0.0
    %v513 = vand.u32 %v248, 2147483648
    %v514 = vsel %vm512, %v513, %v511
    %v515 = vrsqrt.pop %v250
    %v516 = vmul.f32 %v250, %v515
    %vm517 = vcmp.eq.f32.partialorder %v250, inf
    %v518 = vsel %vm517, %v250, %v516
    %vm519 = vcmp.eq.f32.partialorder %v250, 0.0
    %v520 = vand.u32 %v250, 2147483648
    %v521 = vsel %vm519, %v520, %v518
    %v522 = vrsqrt.pop %v252
    %v523 = vmul.f32 %v252, %v522
    %vm524 = vcmp.eq.f32.partialorder %v252, inf
    %v525 = vsel %vm524, %v252, %v523
    %vm526 = vcmp.eq.f32.partialorder %v252, 0.0
    %v527 = vand.u32 %v252, 2147483648
    %v528 = vsel %vm526, %v527, %v525
    %v529 = vrsqrt.pop %v254
    %v530 = vmul.f32 %v254, %v529
    %vm531 = vcmp.eq.f32.partialorder %v254, inf
    %v532 = vsel %vm531, %v254, %v530
    %vm533 = vcmp.eq.f32.partialorder %v254, 0.0
    %v534 = vand.u32 %v254, 2147483648
    %v535 = vsel %vm533, %v534, %v532
    %v536 = vrsqrt.pop %v256
    %v537 = vmul.f32 %v256, %v536
    %vm538 = vcmp.eq.f32.partialorder %v256, inf
    %v539 = vsel %vm538, %v256, %v537
    %vm540 = vcmp.eq.f32.partialorder %v256, 0.0
    %v541 = vand.u32 %v256, 2147483648
    %v542 = vsel %vm540, %v541, %v539
    %v543 = vrsqrt.pop %v258
    %v544 = vmul.f32 %v258, %v543
    %vm545 = vcmp.eq.f32.partialorder %v258, inf
    %v546 = vsel %vm545, %v258, %v544
    %vm547 = vcmp.eq.f32.partialorder %v258, 0.0
    %v548 = vand.u32 %v258, 2147483648
    %v549 = vsel %vm547, %v548, %v546
    %v550 = vrsqrt.pop %v260
    %v551 = vmul.f32 %v260, %v550
    %vm552 = vcmp.eq.f32.partialorder %v260, inf
    %v553 = vsel %vm552, %v260, %v551
    %vm554 = vcmp.eq.f32.partialorder %v260, 0.0
    %v555 = vand.u32 %v260, 2147483648
    %v556 = vsel %vm554, %v555, %v553
    %v557 = vrsqrt.pop %v262
    %v558 = vmul.f32 %v262, %v557
    %vm559 = vcmp.eq.f32.partialorder %v262, inf
    %v560 = vsel %vm559, %v262, %v558
    %vm561 = vcmp.eq.f32.partialorder %v262, 0.0
    %v562 = vand.u32 %v262, 2147483648
    %v563 = vsel %vm561, %v562, %v560
    %v564 = vrsqrt.pop %v264
    %v565 = vmul.f32 %v264, %v564
    %vm566 = vcmp.eq.f32.partialorder %v264, inf
    %v567 = vsel %vm566, %v264, %v565
    %vm568 = vcmp.eq.f32.partialorder %v264, 0.0
    %v569 = vand.u32 %v264, 2147483648
    %v570 = vsel %vm568, %v569, %v567
    %v571 = vrsqrt.pop %v266
    %v572 = vmul.f32 %v266, %v571
    %vm573 = vcmp.eq.f32.partialorder %v266, inf
    %v574 = vsel %vm573, %v266, %v572
    %vm575 = vcmp.eq.f32.partialorder %v266, 0.0
    %v576 = vand.u32 %v266, 2147483648
    %v577 = vsel %vm575, %v576, %v574
    %v578 = vrsqrt.pop %v268
    %v579 = vmul.f32 %v268, %v578
    %vm580 = vcmp.eq.f32.partialorder %v268, inf
    %v581 = vsel %vm580, %v268, %v579
    %vm582 = vcmp.eq.f32.partialorder %v268, 0.0
    %v583 = vand.u32 %v268, 2147483648
    %v584 = vsel %vm582, %v583, %v581
    %v585 = vrsqrt.pop %v270
    %v586 = vmul.f32 %v270, %v585
    %vm587 = vcmp.eq.f32.partialorder %v270, inf
    %v588 = vsel %vm587, %v270, %v586
    %vm589 = vcmp.eq.f32.partialorder %v270, 0.0
    %v590 = vand.u32 %v270, 2147483648
    %v591 = vsel %vm589, %v590, %v588
    %v592 = vrsqrt.pop %v272
    %v593 = vmul.f32 %v272, %v592
    %vm594 = vcmp.eq.f32.partialorder %v272, inf
    %v595 = vsel %vm594, %v272, %v593
    %vm596 = vcmp.eq.f32.partialorder %v272, 0.0
    %v597 = vand.u32 %v272, 2147483648
    %v598 = vsel %vm596, %v597, %v595
    %v599 = vrsqrt.pop %v274
    %v600 = vmul.f32 %v274, %v599
    %vm601 = vcmp.eq.f32.partialorder %v274, inf
    %v602 = vsel %vm601, %v274, %v600
    %vm603 = vcmp.eq.f32.partialorder %v274, 0.0
    %v604 = vand.u32 %v274, 2147483648
    %v605 = vsel %vm603, %v604, %v602
    %v606 = vrsqrt.pop %v276
    %v607 = vmul.f32 %v276, %v606
    %vm608 = vcmp.eq.f32.partialorder %v276, inf
    %v609 = vsel %vm608, %v276, %v607
    %vm610 = vcmp.eq.f32.partialorder %v276, 0.0
    %v611 = vand.u32 %v276, 2147483648
    %v612 = vsel %vm610, %v611, %v609
    %s613 = sld [smem:[#allocation2]]
    %v614 = vstv %s613
    %v615 = vsub.f32 %v614, %v283
    %v616 = vsub.f32 %v614, %v290
    %v617 = vsub.f32 %v614, %v297
    %v618 = vsub.f32 %v614, %v304
    %v619 = vsub.f32 %v614, %v311
    %v620 = vsub.f32 %v614, %v318
    %v621 = vsub.f32 %v614, %v325
    %v622 = vsub.f32 %v614, %v332
    %v623 = vsub.f32 %v614, %v339
    %v624 = vsub.f32 %v614, %v346
    %v625 = vsub.f32 %v614, %v353
    %v626 = vsub.f32 %v614, %v360
    %v627 = vsub.f32 %v614, %v367
    %v628 = vsub.f32 %v614, %v374
    %v629 = vsub.f32 %v614, %v381
    %v630 = vsub.f32 %v614, %v388
    %v631 = vsub.f32 %v614, %v395
    %v632 = vsub.f32 %v614, %v402
    %v633 = vsub.f32 %v614, %v409
    %v634 = vsub.f32 %v614, %v416
    %v635 = vsub.f32 %v614, %v423
    %v636 = vsub.f32 %v614, %v430
    %v637 = vsub.f32 %v614, %v437
    %v638 = vsub.f32 %v614, %v444
    %v639 = vsub.f32 %v614, %v451
    %v640 = vsub.f32 %v614, %v458
    %v641 = vsub.f32 %v614, %v465
    %v642 = vsub.f32 %v614, %v472
    %v643 = vsub.f32 %v614, %v479
    %v644 = vsub.f32 %v614, %v486
    %v645 = vsub.f32 %v614, %v493
    %v646 = vsub.f32 %v614, %v500
    %v647 = vsub.f32 %v614, %v507
    %v648 = vsub.f32 %v614, %v514
    %v649 = vsub.f32 %v614, %v521
    %v650 = vsub.f32 %v614, %v528
    %v651 = vsub.f32 %v614, %v535
    %v652 = vsub.f32 %v614, %v542
    %v653 = vsub.f32 %v614, %v549
    %v654 = vsub.f32 %v614, %v556
    %v655 = vsub.f32 %v614, %v563
    %v656 = vsub.f32 %v614, %v570
    %v657 = vsub.f32 %v614, %v577
    %v658 = vsub.f32 %v614, %v584
    %v659 = vsub.f32 %v614, %v591
    %v660 = vsub.f32 %v614, %v598
    %v661 = vsub.f32 %v614, %v605
    %v662 = vsub.f32 %v614, %v612
    %v711 = vlaneseq
    %v712 = vand.u32 %v711, 127
    %v713 = vlaneseq
    %v714 = vshrl.u32 %v713, 7
    %v715 = vsub.s32 %v712, %v714
    %v716 = vrot.slane %v615, %v715
    %v717 = vadd.s32 %v712, 4294967288
    %v718 = vlaneseq
    %v719 = vshrl.u32 %v718, 7
    %v720 = vsub.s32 %v717, %v719
    %v721 = vrot.slane %v616, %v720
    %vm722 = vcmask 130112
    %v723 = vsel %vm722, %v721, %v716
    %v724 = vadd.s32 %v712, 4294967280
    %v725 = vlaneseq
    %v726 = vshrl.u32 %v725, 7
    %v727 = vsub.s32 %v724, %v726
    %v728 = vrot.slane %v617, %v727
    %vm729 = vcmask 195712
    %v730 = vsel %vm729, %v728, %v723
    %v731 = vadd.s32 %v712, 4294967272
    %v732 = vlaneseq
    %v733 = vshrl.u32 %v732, 7
    %v734 = vsub.s32 %v731, %v733
    %v735 = vrot.slane %v618, %v734
    %vm736 = vcmask 261312
    %v737 = vsel %vm736, %v735, %v730
    %v738 = vadd.s32 %v712, 4294967264
    %v739 = vlaneseq
    %v740 = vshrl.u32 %v739, 7
    %v741 = vsub.s32 %v738, %v740
    %v742 = vrot.slane %v619, %v741
    %vm743 = vcmask 326912
    %v744 = vsel %vm743, %v742, %v737
    %v745 = vadd.s32 %v712, 4294967256
    %v746 = vlaneseq
    %v747 = vshrl.u32 %v746, 7
    %v748 = vsub.s32 %v745, %v747
    %v749 = vrot.slane %v620, %v748
    %vm750 = vcmask 392512
    %v751 = vsel %vm750, %v749, %v744
    %v752 = vadd.s32 %v712, 4294967248
    %v753 = vlaneseq
    %v754 = vshrl.u32 %v753, 7
    %v755 = vsub.s32 %v752, %v754
    %v756 = vrot.slane %v621, %v755
    %vm757 = vcmask 458112
    %v758 = vsel %vm757, %v756, %v751
    %v759 = vadd.s32 %v712, 4294967240
    %v760 = vlaneseq
    %v761 = vshrl.u32 %v760, 7
    %v762 = vsub.s32 %v759, %v761
    %v763 = vrot.slane %v622, %v762
    %vm764 = vcmask 523712
    %v765 = vsel %vm764, %v763, %v758
    %v766 = vadd.s32 %v712, 4294967232
    %v767 = vlaneseq
    %v768 = vshrl.u32 %v767, 7
    %v769 = vsub.s32 %v766, %v768
    %v770 = vrot.slane %v623, %v769
    %vm771 = vcmask 589312
    %v772 = vsel %vm771, %v770, %v765
    %v773 = vadd.s32 %v712, 4294967224
    %v774 = vlaneseq
    %v775 = vshrl.u32 %v774, 7
    %v776 = vsub.s32 %v773, %v775
    %v777 = vrot.slane %v624, %v776
    %vm778 = vcmask 654912
    %v779 = vsel %vm778, %v777, %v772
    %v780 = vadd.s32 %v712, 4294967216
    %v781 = vlaneseq
    %v782 = vshrl.u32 %v781, 7
    %v783 = vsub.s32 %v780, %v782
    %v784 = vrot.slane %v625, %v783
    %vm785 = vcmask 720512
    %v786 = vsel %vm785, %v784, %v779
    %v787 = vadd.s32 %v712, 4294967208
    %v788 = vlaneseq
    %v789 = vshrl.u32 %v788, 7
    %v790 = vsub.s32 %v787, %v789
    %v791 = vrot.slane %v626, %v790
    %vm792 = vcmask 786112
    %v793 = vsel %vm792, %v791, %v786
    %v794 = vadd.s32 %v712, 4294967200
    %v795 = vlaneseq
    %v796 = vshrl.u32 %v795, 7
    %v797 = vsub.s32 %v794, %v796
    %v798 = vrot.slane %v627, %v797
    %vm799 = vcmask 851712
    %v800 = vsel %vm799, %v798, %v793
    %v801 = vadd.s32 %v712, 4294967192
    %v802 = vlaneseq
    %v803 = vshrl.u32 %v802, 7
    %v804 = vsub.s32 %v801, %v803
    %v805 = vrot.slane %v628, %v804
    %vm806 = vcmask 917312
    %v807 = vsel %vm806, %v805, %v800
    %v808 = vadd.s32 %v712, 4294967184
    %v809 = vlaneseq
    %v810 = vshrl.u32 %v809, 7
    %v811 = vsub.s32 %v808, %v810
    %v812 = vrot.slane %v629, %v811
    %vm813 = vcmask 982912
    %v814 = vsel %vm813, %v812, %v807
    %v815 = vadd.s32 %v712, 4294967176
    %v816 = vlaneseq
    %v817 = vshrl.u32 %v816, 7
    %v818 = vsub.s32 %v815, %v817
    %v819 = vrot.slane %v630, %v818
    %vm820 = vcmask 1048512
    %v821 = vsel %vm820, %v819, %v814
    %v822 = vlaneseq
    %v823 = vshrl.u32 %v822, 7
    %v824 = vsub.s32 %v712, %v823
    %v825 = vrot.slane %v631, %v824
    %v826 = vlaneseq
    %v827 = vshrl.u32 %v826, 7
    %v828 = vsub.s32 %v717, %v827
    %v829 = vrot.slane %v632, %v828
    %v830 = vsel %vm722, %v829, %v825
    %v831 = vlaneseq
    %v832 = vshrl.u32 %v831, 7
    %v833 = vsub.s32 %v724, %v832
    %v834 = vrot.slane %v633, %v833
    %v835 = vsel %vm729, %v834, %v830
    %v836 = vlaneseq
    %v837 = vshrl.u32 %v836, 7
    %v838 = vsub.s32 %v731, %v837
    %v839 = vrot.slane %v634, %v838
    %v840 = vsel %vm736, %v839, %v835
    %v841 = vlaneseq
    %v842 = vshrl.u32 %v841, 7
    %v843 = vsub.s32 %v738, %v842
    %v844 = vrot.slane %v635, %v843
    %v845 = vsel %vm743, %v844, %v840
    %v846 = vlaneseq
    %v847 = vshrl.u32 %v846, 7
    %v848 = vsub.s32 %v745, %v847
    %v849 = vrot.slane %v636, %v848
    %v850 = vsel %vm750, %v849, %v845
    %v851 = vlaneseq
    %v852 = vshrl.u32 %v851, 7
    %v853 = vsub.s32 %v752, %v852
    %v854 = vrot.slane %v637, %v853
    %v855 = vsel %vm757, %v854, %v850
    %v856 = vlaneseq
    %v857 = vshrl.u32 %v856, 7
    %v858 = vsub.s32 %v759, %v857
    %v859 = vrot.slane %v638, %v858
    %v860 = vsel %vm764, %v859, %v855
    %v861 = vlaneseq
    %v862 = vshrl.u32 %v861, 7
    %v863 = vsub.s32 %v766, %v862
    %v864 = vrot.slane %v639, %v863
    %v865 = vsel %vm771, %v864, %v860
    %v866 = vlaneseq
    %v867 = vshrl.u32 %v866, 7
    %v868 = vsub.s32 %v773, %v867
    %v869 = vrot.slane %v640, %v868
    %v870 = vsel %vm778, %v869, %v865
    %v871 = vlaneseq
    %v872 = vshrl.u32 %v871, 7
    %v873 = vsub.s32 %v780, %v872
    %v874 = vrot.slane %v641, %v873
    %v875 = vsel %vm785, %v874, %v870
    %v876 = vlaneseq
    %v877 = vshrl.u32 %v876, 7
    %v878 = vsub.s32 %v787, %v877
    %v879 = vrot.slane %v642, %v878
    %v880 = vsel %vm792, %v879, %v875
    %v881 = vlaneseq
    %v882 = vshrl.u32 %v881, 7
    %v883 = vsub.s32 %v794, %v882
    %v884 = vrot.slane %v643, %v883
    %v885 = vsel %vm799, %v884, %v880
    %v886 = vlaneseq
    %v887 = vshrl.u32 %v886, 7
    %v888 = vsub.s32 %v801, %v887
    %v889 = vrot.slane %v644, %v888
    %v890 = vsel %vm806, %v889, %v885
    %v891 = vlaneseq
    %v892 = vshrl.u32 %v891, 7
    %v893 = vsub.s32 %v808, %v892
    %v894 = vrot.slane %v645, %v893
    %v895 = vsel %vm813, %v894, %v890
    %v896 = vlaneseq
    %v897 = vshrl.u32 %v896, 7
    %v898 = vsub.s32 %v815, %v897
    %v899 = vrot.slane %v646, %v898
    %v900 = vsel %vm820, %v899, %v895
    %v901 = vlaneseq
    %v902 = vshrl.u32 %v901, 7
    %v903 = vsub.s32 %v712, %v902
    %v904 = vrot.slane %v647, %v903
    %v905 = vlaneseq
    %v906 = vshrl.u32 %v905, 7
    %v907 = vsub.s32 %v717, %v906
    %v908 = vrot.slane %v648, %v907
    %v909 = vsel %vm722, %v908, %v904
    %v910 = vlaneseq
    %v911 = vshrl.u32 %v910, 7
    %v912 = vsub.s32 %v724, %v911
    %v913 = vrot.slane %v649, %v912
    %v914 = vsel %vm729, %v913, %v909
    %v915 = vlaneseq
    %v916 = vshrl.u32 %v915, 7
    %v917 = vsub.s32 %v731, %v916
    %v918 = vrot.slane %v650, %v917
    %v919 = vsel %vm736, %v918, %v914
    %v920 = vlaneseq
    %v921 = vshrl.u32 %v920, 7
    %v922 = vsub.s32 %v738, %v921
    %v923 = vrot.slane %v651, %v922
    %v924 = vsel %vm743, %v923, %v919
    %v925 = vlaneseq
    %v926 = vshrl.u32 %v925, 7
    %v927 = vsub.s32 %v745, %v926
    %v928 = vrot.slane %v652, %v927
    %v929 = vsel %vm750, %v928, %v924
    %v930 = vlaneseq
    %v931 = vshrl.u32 %v930, 7
    %v932 = vsub.s32 %v752, %v931
    %v933 = vrot.slane %v653, %v932
    %v934 = vsel %vm757, %v933, %v929
    %v935 = vlaneseq
    %v936 = vshrl.u32 %v935, 7
    %v937 = vsub.s32 %v759, %v936
    %v938 = vrot.slane %v654, %v937
    %v939 = vsel %vm764, %v938, %v934
    %v940 = vlaneseq
    %v941 = vshrl.u32 %v940, 7
    %v942 = vsub.s32 %v766, %v941
    %v943 = vrot.slane %v655, %v942
    %v944 = vsel %vm771, %v943, %v939
    %v945 = vlaneseq
    %v946 = vshrl.u32 %v945, 7
    %v947 = vsub.s32 %v773, %v946
    %v948 = vrot.slane %v656, %v947
    %v949 = vsel %vm778, %v948, %v944
    %v950 = vlaneseq
    %v951 = vshrl.u32 %v950, 7
    %v952 = vsub.s32 %v780, %v951
    %v953 = vrot.slane %v657, %v952
    %v954 = vsel %vm785, %v953, %v949
    %v955 = vlaneseq
    %v956 = vshrl.u32 %v955, 7
    %v957 = vsub.s32 %v787, %v956
    %v958 = vrot.slane %v658, %v957
    %v959 = vsel %vm792, %v958, %v954
    %v960 = vlaneseq
    %v961 = vshrl.u32 %v960, 7
    %v962 = vsub.s32 %v794, %v961
    %v963 = vrot.slane %v659, %v962
    %v964 = vsel %vm799, %v963, %v959
    %v965 = vlaneseq
    %v966 = vshrl.u32 %v965, 7
    %v967 = vsub.s32 %v801, %v966
    %v968 = vrot.slane %v660, %v967
    %v969 = vsel %vm806, %v968, %v964
    %v970 = vlaneseq
    %v971 = vshrl.u32 %v970, 7
    %v972 = vsub.s32 %v808, %v971
    %v973 = vrot.slane %v661, %v972
    %v974 = vsel %vm813, %v973, %v969
    %v975 = vlaneseq
    %v976 = vshrl.u32 %v975, 7
    %v977 = vsub.s32 %v815, %v976
    %v978 = vrot.slane %v662, %v977
    %v979 = vsel %vm820, %v978, %v974
    %vm980 = vcmask 1041409
    %v981 = vsel %vm980, %v900, %v821
    %vm982 = vcmask 1042434
    %v983 = vsel %vm982, %v979, %v981
    %985 = vst [vmem:[#allocation6] sm:$0x7] %v983
    // Predicated region
    $region18: #{tpu_custom_call.1} parent=1 // pred_check
      _
    $region19: #{tpu_custom_call.1} parent=1 // pred_check_branch
      %987 = sbr.rel (0) target = $region21
    $region20: #{tpu_custom_call.1} parent=1 // pred_region
      %s989 = ssub.s32 64, 64
      %990 = vsyncadd [#allocation5], %s989
      %s992 = sshll.u32 [#allocation6], 4
      %s993 = int_to_ptr.vmem [resolvable:$true] %s992
      %995 = dma.vmem_to_hbm [thread:$0]  %s993, 64, %s3, [#allocation5]
    $region21: #{tpu_custom_call.1} parent=1 // pred_fallthru
      _
    // Predicated region
    $region22: #{tpu_custom_call.1} parent=1 // pred_check
      _
    $region23: #{tpu_custom_call.1} parent=1 // pred_check_branch
      %997 = sbr.rel (0) target = $region25
    $region24: #{tpu_custom_call.1} parent=1 // pred_region
      %998 = dma.done [#allocation5], 64
    $region25: #{tpu_custom_call.1} parent=1 // pred_fallthru
      _
    %999 = vsyncpa [#allocation4], 1
    %1000 = vsyncpa [#allocation5], 1

</llo_original>
